<compile_context>
chip_gen: v5e
topology: v5e:2x2
jax: 0.10.0
libtpu: 0.0.40
codegen_flags: <defaults>
</compile_context>

<pallas_src>
import functools

import jax
import jax.numpy as jnp
from jax.experimental import pallas as pl
from jax.experimental.pallas import tpu as pltpu


def _round_up(n, m):
    return ((n + m - 1) // m) * m


def _cdiv(a, b):
    return -(-a // b)


def net_kernel(x_ref, w1m_ref, b1_ref, w2t_ref, b2_ref, out_ref):
    # Cast x to the matmul operand dtype in-kernel (free VPU slack; no-op for
    # f32 params).  Mask is already fused into w1m.
    x = x_ref[...].astype(w1m_ref.dtype)
    h = jnp.dot(x, w1m_ref[...], preferred_element_type=jnp.float32)
    h = jnp.maximum(h + b1_ref[...], 0.0)                 # f32 bias + ReLU (VPU)
    o = jnp.dot(h.astype(w2t_ref.dtype), w2t_ref[...],
                preferred_element_type=jnp.float32)
    out_ref[...] = (o + b2_ref[...]).astype(out_ref.dtype)


def prepare_params(w1, b1, pathway_info, w2, b2, *, param_dtype=jnp.bfloat16):
    """One-time parameter prep (batch independent, amortized across calls).

    w1: (H, D_in), b1: (H,), pathway_info: (D_in, H), w2: (O, H), b2: (O,).
    Mask fusion is done in f32, then matmul operands are cast to param_dtype
    (bf16 default: MXU-native on v5e/v6e/v7x).  Biases stay f32.
    """
    H, D_in = w1.shape
    O = w2.shape[0]
    masked_w1t = (pathway_info * jnp.transpose(w1)).astype(param_dtype)  # (D_in, H)
    b1_2d = b1.reshape(1, H).astype(jnp.float32)
    w2t = jnp.transpose(w2).astype(param_dtype)                          # (H, O)
    b2_2d = b2.reshape(1, O).astype(jnp.float32)
    return masked_w1t, b1_2d, w2t, b2_2d


@functools.partial(jax.jit, static_argnames=("tm",))
def net_forward(x, masked_w1t, b1_2d, w2t, b2_2d, *, tm=1024):
    """x: (B, D_in) float32. Returns (B, O) float32."""
    B, D_in = x.shape
    D_in_w, H = masked_w1t.shape
    assert D_in == D_in_w
    O = w2t.shape[1]

    # Batch tile: multiple of 8 (sublane constraint).  For large batches cap
    # TM so the grid has >= 2 steps (v7x megacore split).  Grid is cdiv(B,TM)
    # with no host-side padding: Pallas masks the ragged tail block's
    # out-of-bounds rows (each output row depends only on its own input row).
    tm = _round_up(min(max(tm, 8), 8192), 8)
    B8 = _round_up(B, 8)
    steps = _cdiv(B8, tm)
    if steps == 1 and B8 >= 1024:
        steps = 2
    TM = min(_round_up(_cdiv(B8, steps), 8), tm)
    grid = (_cdiv(B, TM),)

    const = lambda i: (0, 0)  # weights/biases stay VMEM-resident across steps

    w_itemsize = jnp.dtype(masked_w1t.dtype).itemsize
    cost = pl.CostEstimate(
        flops=2 * B * (D_in * H + H * O),
        transcendentals=0,
        bytes_accessed=(x.size * x.dtype.itemsize
                        + (masked_w1t.size + w2t.size) * w_itemsize
                        + (b1_2d.size + b2_2d.size) * 4
                        + B * O * 4),
    )

    return pl.pallas_call(
        net_kernel,
        out_shape=jax.ShapeDtypeStruct((B, O), jnp.float32),
        grid=grid,
        in_specs=[
            pl.BlockSpec((TM, D_in), lambda i: (i, 0)),   # x tile (pipelined)
            pl.BlockSpec((D_in, H), const),               # mask-fused fc1 weight
            pl.BlockSpec((1, H), const),                  # fc1 bias (f32)
            pl.BlockSpec((H, O), const),                  # fc2 weight (transposed)
            pl.BlockSpec((1, O), const),                  # fc2 bias (f32)
        ],
        out_specs=pl.BlockSpec((TM, O), lambda i: (i, 0)),
        compiler_params=pltpu.CompilerParams(
            dimension_semantics=("parallel",)),
        cost_estimate=cost,
    )(x, masked_w1t, b1_2d, w2t, b2_2d)


def reference_forward(x, w1, b1, pathway_info, w2, b2):
    # Pure-JAX reference mirroring the PyTorch forward exactly.
    pathway = x @ (pathway_info * w1.T) + b1
    pathway = jnp.maximum(pathway, 0.0)
    return pathway @ w2.T + b2


if __name__ == "__main__":
    # Small shapes consistent with the module.
    input_dim, hidden_dim, output_dim = 32, 64, 16

    key = jax.random.PRNGKey(0)
    k_x, k_w1, k_b1, k_path, k_w2, k_b2 = jax.random.split(key, 6)

    # Deterministic parameter init (roughly Linear-style uniform scaling).
    w1 = jax.random.uniform(k_w1, (hidden_dim, input_dim), jnp.float32,
                            -1.0 / input_dim ** 0.5, 1.0 / input_dim ** 0.5)
    b1 = jax.random.uniform(k_b1, (hidden_dim,), jnp.float32,
                            -1.0 / input_dim ** 0.5, 1.0 / input_dim ** 0.5)
    w2 = jax.random.uniform(k_w2, (output_dim, hidden_dim), jnp.float32,
                            -1.0 / hidden_dim ** 0.5, 1.0 / hidden_dim ** 0.5)
    b2 = jax.random.uniform(k_b2, (output_dim,), jnp.float32,
                            -1.0 / hidden_dim ** 0.5, 1.0 / hidden_dim ** 0.5)
    # pathway_info: binary connectivity mask (input_dim, hidden_dim), .float().
    pathway_info = jax.random.bernoulli(
        k_path, 0.5, (input_dim, hidden_dim)).astype(jnp.float32)

    # --- Test 1: strict f32 path (exact-ish vs. reference), even batch. -----
    B = 8
    x = jax.random.normal(k_x, (B, input_dim), dtype=jnp.float32)
    params_f32 = prepare_params(w1, b1, pathway_info, w2, b2,
                                param_dtype=jnp.float32)
    out = jax.block_until_ready(net_forward(x, *params_f32))
    ref = reference_forward(x, w1, b1, pathway_info, w2, b2)
    assert out.shape == (B, output_dim)
    assert jnp.allclose(out, ref, atol=1e-5, rtol=1e-5), "f32 mismatch vs ref"

    # --- Test 2: strict f32 path with a ragged batch (tail-block masking). ---
    B2 = 13
    x2 = jax.random.normal(jax.random.PRNGKey(1), (B2, input_dim), jnp.float32)
    out2 = jax.block_until_ready(net_forward(x2, *params_f32))
    ref2 = reference_forward(x2, w1, b1, pathway_info, w2, b2)
    assert out2.shape == (B2, output_dim)
    assert jnp.allclose(out2, ref2, atol=1e-5, rtol=1e-5), "ragged mismatch"

    # --- Test 3: production bf16 operand path (bf16-level tolerance). -------
    params_bf16 = prepare_params(w1, b1, pathway_info, w2, b2)  # bf16 default
    out3 = jax.block_until_ready(net_forward(x, *params_bf16))
    assert out3.shape == (B, output_dim)
    assert jnp.allclose(out3, ref, atol=5e-2, rtol=5e-2), "bf16 mismatch"

    print("KERNEL_OK")
</pallas_src>

<mosaic_0001>
module attributes {stable_mosaic.version = 11 : i64} {
  func.func @net_kernel(%arg0: i32, %arg1: memref<8x32xf32, #tpu.memory_space<vmem>>, %arg2: memref<32x64xf32, #tpu.memory_space<vmem>>, %arg3: memref<1x64xf32, #tpu.memory_space<vmem>>, %arg4: memref<64x16xf32, #tpu.memory_space<vmem>>, %arg5: memref<1x16xf32, #tpu.memory_space<vmem>>, %arg6: memref<8x16xf32, #tpu.memory_space<vmem>>) attributes {dimension_semantics = [#tpu.dimension_semantics<parallel>], iteration_bounds = array<i64: 1>, scalar_prefetch = 0 : i64, scratch_operands = 0 : i64, tpu.core_type = #tpu.core_type<tc>, window_params = [{transform_indices = @transform_0, window_bounds = array<i64: 8, 32>}, {pipeline_mode = #tpu.pipeline_mode<synchronous>, transform_indices = @transform_1, window_bounds = array<i64: 32, 64>}, {pipeline_mode = #tpu.pipeline_mode<synchronous>, transform_indices = @transform_2, window_bounds = array<i64: 1, 64>}, {pipeline_mode = #tpu.pipeline_mode<synchronous>, transform_indices = @transform_3, window_bounds = array<i64: 64, 16>}, {pipeline_mode = #tpu.pipeline_mode<synchronous>, transform_indices = @transform_4, window_bounds = array<i64: 1, 16>}, {transform_indices = @transform_5, window_bounds = array<i64: 8, 16>}]} {
    %c0 = arith.constant 0 : index
    %c0_0 = arith.constant 0 : index
    %0 = vector.load %arg1[%c0, %c0_0] : memref<8x32xf32, #tpu.memory_space<vmem>>, vector<8x32xf32>
    %c0_1 = arith.constant 0 : index
    %c0_2 = arith.constant 0 : index
    %1 = vector.load %arg2[%c0_1, %c0_2] : memref<32x64xf32, #tpu.memory_space<vmem>>, vector<32x64xf32>
    %cst = arith.constant dense<0.000000e+00> : vector<8x64xf32>
    %2 = tpu.matmul %0, %1, %cst {dimension_numbers = #tpu.dot_dimension_numbers<[1], [0], [0], [1], [0, 0, 1, 1], [], []>} : vector<8x32xf32>, vector<32x64xf32>, vector<8x64xf32> -> vector<8x64xf32>
    %c0_3 = arith.constant 0 : index
    %c0_4 = arith.constant 0 : index
    %3 = vector.load %arg3[%c0_3, %c0_4] : memref<1x64xf32, #tpu.memory_space<vmem>>, vector<1x64xf32>
    %4 = vector.broadcast %3 : vector<1x64xf32> to vector<8x64xf32>
    %5 = arith.addf %2, %4 : vector<8x64xf32>
    %cst_5 = arith.constant 0.000000e+00 : f32
    %6 = vector.broadcast %cst_5 : f32 to vector<8x64xf32>
    %7 = arith.maximumf %5, %6 : vector<8x64xf32>
    %c0_6 = arith.constant 0 : index
    %c0_7 = arith.constant 0 : index
    %8 = vector.load %arg4[%c0_6, %c0_7] : memref<64x16xf32, #tpu.memory_space<vmem>>, vector<64x16xf32>
    %cst_8 = arith.constant dense<0.000000e+00> : vector<8x16xf32>
    %9 = tpu.matmul %7, %8, %cst_8 {dimension_numbers = #tpu.dot_dimension_numbers<[1], [0], [0], [1], [0, 0, 1, 1], [], []>} : vector<8x64xf32>, vector<64x16xf32>, vector<8x16xf32> -> vector<8x16xf32>
    %c0_9 = arith.constant 0 : index
    %c0_10 = arith.constant 0 : index
    %10 = vector.load %arg5[%c0_9, %c0_10] : memref<1x16xf32, #tpu.memory_space<vmem>>, vector<1x16xf32>
    %11 = vector.broadcast %10 : vector<1x16xf32> to vector<8x16xf32>
    %12 = arith.addf %9, %11 : vector<8x16xf32>
    %c0_11 = arith.constant 0 : index
    %c0_12 = arith.constant 0 : index
    %13 = vector.load %arg6[%c0_11, %c0_12] : memref<8x16xf32, #tpu.memory_space<vmem>>, vector<8x16xf32>
    tpu.vector_store %arg6[%c0_11, %c0_12], %12 {strides = array<i32>} : memref<8x16xf32, #tpu.memory_space<vmem>>, vector<8x16xf32>,
    return
  }
  func.func @transform_0(%arg0: i32) -> (i32, i32) {
    %c0_i32 = arith.constant 0 : i32
    %c0_i32_0 = arith.constant 0 : i32
    return %arg0, %c0_i32 : i32, i32
  }
  func.func @transform_1(%arg0: i32) -> (i32, i32) {
    %c0_i32 = arith.constant 0 : i32
    %c0_i32_0 = arith.constant 0 : i32
    %c0_i32_1 = arith.constant 0 : i32
    return %c0_i32, %c0_i32_0 : i32, i32
  }
  func.func @transform_2(%arg0: i32) -> (i32, i32) {
    %c0_i32 = arith.constant 0 : i32
    %c0_i32_0 = arith.constant 0 : i32
    %c0_i32_1 = arith.constant 0 : i32
    return %c0_i32, %c0_i32_0 : i32, i32
  }
  func.func @transform_3(%arg0: i32) -> (i32, i32) {
    %c0_i32 = arith.constant 0 : i32
    %c0_i32_0 = arith.constant 0 : i32
    %c0_i32_1 = arith.constant 0 : i32
    return %c0_i32, %c0_i32_0 : i32, i32
  }
  func.func @transform_4(%arg0: i32) -> (i32, i32) {
    %c0_i32 = arith.constant 0 : i32
    %c0_i32_0 = arith.constant 0 : i32
    %c0_i32_1 = arith.constant 0 : i32
    return %c0_i32, %c0_i32_0 : i32, i32
  }
  func.func @transform_5(%arg0: i32) -> (i32, i32) {
    %c0_i32 = arith.constant 0 : i32
    %c0_i32_0 = arith.constant 0 : i32
    return %arg0, %c0_i32 : i32, i32
  }
}

</mosaic_0001>

<llo_original>
// kernel: net_forward.1
$region0: #{net_forward.1}
  #allocation0 [shape = 'u32[]', space=smem, size = 0x4, offset = 0x4, fixed_abs, tag = 'smem constant byte address 0x4 - core index']
  #allocation1 [shape = 'u32[72,128]{1,0:T(1,128)}', space=vmem, size = 0x9000, scoped, tag = 'internal scratch']
  %s0 = inlined_call_operand.vmem [shape: f32[8,32], index: 0, kind: input, shape index: {}]
  %s1 = inlined_call_operand.vmem [shape: f32[32,64], index: 1, kind: input, shape index: {}]
  %s2 = inlined_call_operand.vmem [shape: f32[1,64], index: 2, kind: input, shape index: {}]
  %s3 = inlined_call_operand.vmem [shape: f32[64,16], index: 3, kind: input, shape index: {}]
  %s4 = inlined_call_operand.vmem [shape: f32[1,16], index: 4, kind: input, shape index: {}]
  %s5 = inlined_call_operand.hbm [shape: f32[8,16], index: 5, kind: output, shape index: {}]
  %s6 = sld [smem:[#allocation0]]
  $region30: #{net_forward.1} parent=0
    _
  %s8 = ssub.s32 1, %s6
  %s9 = scalar_select 0, %s8, %s6
  $region1: #{net_forward.1} parent=0
    #allocation2 [shape = 'u8[4096]{0}', space=vmem, size = 0x1000, scoped, tag = 'output window, operand 0, single buffered']
    #allocation3 [shape = 's32[1]{0}', space=sflag, size = 0x4, scoped, tag = 'scoped memory for net_forward.1']
    %10 = vsyncpa [#allocation3], 0
    // Predicated region
    $region2: #{net_forward.1} parent=1 // pred_check
      _
    $region3: #{net_forward.1} parent=1 // pred_check_branch
      %12 = sbr.rel (0) target = $region5
    $region4: #{net_forward.1} parent=1 // pred_region
      _
    $region5: #{net_forward.1} parent=1 // pred_fallthru
      _
    // Predicated region
    $region6: #{net_forward.1} parent=1 // pred_check
      _
    $region7: #{net_forward.1} parent=1 // pred_check_branch
      %14 = sbr.rel (0) target = $region9
    $region8: #{net_forward.1} parent=1 // pred_region
      _
    $region9: #{net_forward.1} parent=1 // pred_fallthru
      _
    // Predicated region
    $region10: #{net_forward.1} parent=1 // pred_check
      _
    $region11: #{net_forward.1} parent=1 // pred_check_branch
      %16 = sbr.rel (0) target = $region13
    $region12: #{net_forward.1} parent=1 // pred_region
      _
    $region13: #{net_forward.1} parent=1 // pred_fallthru
      _
    // Predicated region
    $region14: #{net_forward.1} parent=1 // pred_check
      _
    $region15: #{net_forward.1} parent=1 // pred_check_branch
      %18 = sbr.rel (0) target = $region17
    $region16: #{net_forward.1} parent=1 // pred_region
      _
    $region17: #{net_forward.1} parent=1 // pred_fallthru
      _
    // Predicated region
    $region18: #{net_forward.1} parent=1 // pred_check
      _
    $region19: #{net_forward.1} parent=1 // pred_check_branch
      %20 = sbr.rel (0) target = $region21
    $region20: #{net_forward.1} parent=1 // pred_region
      _
    $region21: #{net_forward.1} parent=1 // pred_fallthru
      _
    %v21 = vld [vmem:[%s0] sm:$0xff]
    %v22 = vld [vmem:[%s1] sm:$0xff]
    %v23 = vld [vmem:[%s1 + $0x8] sm:$0xff]
    %v24 = vld [vmem:[%s1 + $0x10] sm:$0xff]
    %v25 = vld [vmem:[%s1 + $0x18] sm:$0xff]
    %v26 = vld [vmem:[%s2] sm:$0x1]
    %v28 = vperm.slane %v26, 0
    %vm30 = vcmask 261120
    %v32 = vsel %vm30, %v21, 0
    %34 = vmatpush.msra.mxu0 0.0
    %35 = vmatpush.msra.mxu0 0.0
    %36 = vmatpush.msra.mxu0 0.0
    %37 = vmatpush.msra.mxu0 0.0
    %38 = vmatpush.msra.mxu0 0.0
    %39 = vmatpush.msra.mxu0 0.0
    %40 = vmatpush.msra.mxu0 0.0
    %41 = vmatpush.msra.mxu0 0.0
    %42 = vmatpush.msra.mxu0 0.0
    %43 = vmatpush.msra.mxu0 0.0
    %44 = vmatpush.msra.mxu0 0.0
    %45 = vmatpush.msra.mxu0 0.0
    %46 = vmatpush.msra.mxu0 %v25
    %47 = vmatpush.msra.mxu0 %v24
    %48 = vmatpush.msra.mxu0 %v23
    %49 = vmatpush.msra.mxu0 %v22
    %50 = vmatmul.f32.gmra.mxu0 %v32
    %v51 = vpop.f32.mrf.mxu0
    %v52 = vadd.f32 %v28, %v51
    %53 = vdwg.mxu0
    %v54 = vmax.f32 %v52, 0.0
    %v55 = vld [vmem:[%s3] sm:$0xff]
    %v56 = vld [vmem:[%s3 + $0x8] sm:$0xff]
    %v57 = vld [vmem:[%s3 + $0x10] sm:$0xff]
    %v58 = vld [vmem:[%s3 + $0x18] sm:$0xff]
    %v59 = vld [vmem:[%s3 + $0x20] sm:$0xff]
    %v60 = vld [vmem:[%s3 + $0x28] sm:$0xff]
    %v61 = vld [vmem:[%s3 + $0x30] sm:$0xff]
    %v62 = vld [vmem:[%s3 + $0x38] sm:$0xff]
    %v63 = vld [vmem:[%s4] sm:$0x1]
    %v65 = vperm.slane %v63, 0
    %vm67 = vcmask 523264
    %v69 = vsel %vm67, %v54, 0
    %71 = vmatpush.msra.mxu0 0.0
    %72 = vmatpush.msra.mxu0 0.0
    %73 = vmatpush.msra.mxu0 0.0
    %74 = vmatpush.msra.mxu0 0.0
    %75 = vmatpush.msra.mxu0 0.0
    %76 = vmatpush.msra.mxu0 0.0
    %77 = vmatpush.msra.mxu0 0.0
    %78 = vmatpush.msra.mxu0 0.0
    %79 = vmatpush.msra.mxu0 %v62
    %80 = vmatpush.msra.mxu0 %v61
    %81 = vmatpush.msra.mxu0 %v60
    %82 = vmatpush.msra.mxu0 %v59
    %83 = vmatpush.msra.mxu0 %v58
    %84 = vmatpush.msra.mxu0 %v57
    %85 = vmatpush.msra.mxu0 %v56
    %86 = vmatpush.msra.mxu0 %v55
    %87 = vmatmul.f32.gmra.mxu0 %v69
    %v88 = vpop.f32.mrf.mxu0
    %v89 = vadd.f32 %v65, %v88
    %90 = vdwg.mxu0
    %vm91 = vcmask 130048
    %92 = vst.msk [vmem:[#allocation2] sm:$0xff] %vm91, %v89
    // Predicated region
    $region22: #{net_forward.1} parent=1 // pred_check
      _
    $region23: #{net_forward.1} parent=1 // pred_check_branch
      %94 = sbr.rel (0) target = $region25
    $region24: #{net_forward.1} parent=1 // pred_region
      %96 = vsyncadd [#allocation3], 0
      %s98 = sshll.u32 [#allocation2], 4
      %s99 = int_to_ptr.vmem [resolvable:$true] %s98
      %s100 = sshll.u32 %s5, 4
      %s101 = int_to_ptr.hbm [resolvable:$true] %s100
      %103 = dma.vmem_to_hbm [thread:$0]  %s99, 128, %s101, [#allocation3]
    $region25: #{net_forward.1} parent=1 // pred_fallthru
      _
    // Predicated region
    $region26: #{net_forward.1} parent=1 // pred_check
      _
    $region27: #{net_forward.1} parent=1 // pred_check_branch
      %105 = sbr.rel (0) target = $region29
    $region28: #{net_forward.1} parent=1 // pred_region
      %107 = dma.done [#allocation3], 128
    $region29: #{net_forward.1} parent=1 // pred_fallthru
      _
    %108 = vsyncpa [#allocation3], 1

</llo_original>
